<compile_context>
chip_gen: v5e
topology: v5e:2x2
jax: 0.10.0
libtpu: 0.0.40
codegen_flags: <defaults>
</compile_context>

<pallas_src>
import jax
import jax.numpy as jnp
import numpy as np
from jax.experimental import pallas as pl
from jax.experimental.pallas import tpu as pltpu


# ----------------------------- math helpers -------------------------------------

def _elu(x):
    # ELU(alpha=1): x if x > 0 else exp(x) - 1.  Clamp the exp argument so the
    # untaken branch never overflows.
    return jnp.where(x > 0, x, jnp.exp(jnp.minimum(x, 0.0)) - 1.0)


def create_sinusoidal_table(n_pos, dim):
    """Same math as create_sinusoidal_embeddings in the PyTorch reference."""
    position_enc = np.array(
        [[pos / np.power(10000, 2 * (j // 2) / dim) for j in range(dim)]
         for pos in range(n_pos)])
    out = np.zeros((n_pos, dim), dtype=np.float32)
    out[:, 0::2] = np.sin(position_enc[:, 0::2])
    out[:, 1::2] = np.cos(position_enc[:, 1::2])
    return jnp.asarray(out)


# ----------------------------- fused POSEmbeddings kernel -----------------------

def _pos_embeddings_kernel(x_ref,      # (B, S, d_model)     f32
                           pos_ref,    # (S, d_pos)          f32 (rows cid*S .. cid*S+S)
                           we_ref,     # (d_model, d_model)  f32
                           wp_ref,     # (d_pos, d_model)    f32
                           b_ref,      # (1, d_model)        f32
                           out_ref,    # (B, S, d_model)     f32
                           cpos_ref):  # (B, d_pos)          f32
    pos = pos_ref[...]                          # (S, d_pos)
    w_e = we_ref[...]                           # (d_model, d_model)

    # Batch-invariant position contribution: pos @ W_p + b, computed ONCE per call.
    pos_contrib = jnp.dot(pos, wp_ref[...],
                          preferred_element_type=jnp.float32) + b_ref[...]   # (S, d_model)

    # Per-batch part: x @ W_e.  B is a tiny static constant, so a static loop over
    # sublane-squeezed (S, d_model) slices is the cheapest correct form.
    for b in range(x_ref.shape[0]):
        y = jnp.dot(x_ref[b], w_e, preferred_element_type=jnp.float32) + pos_contrib
        out_ref[b] = _elu(y).astype(out_ref.dtype)

    # cpos_embed: batch-invariant mean over the sequence, computed once and
    # broadcast to all batch rows.
    cpos = jnp.mean(pos, axis=0, keepdims=True)                              # (1, d_pos)
    cpos_ref[...] = jnp.broadcast_to(cpos, cpos_ref.shape).astype(cpos_ref.dtype)


def pos_embeddings_forward(embeddings, cid, pos_table, merge_w, merge_b):
    """POSEmbeddings.forward.

    embeddings: (B, S, d_model) f32
    cid:        chunk id (Python int or traced int scalar)
    pos_table:  (max_seq_len, d_pos) f32 embedding table
    merge_w:    (d_model + d_pos, d_model) f32 (nn.Linear weight, pre-transposed)
    merge_b:    (1, d_model) f32
    returns (out (B, S, d_model) f32, cpos_embed (B, d_pos) f32)
    """
    B, S, d_model = embeddings.shape
    n_pos, d_pos = pos_table.shape
    assert merge_w.shape == (d_model + d_pos, d_model)

    # Split the merge weight so the kernel never concatenates along lanes.
    w_e = merge_w[:d_model]          # (d_model, d_model)
    w_p = merge_w[d_model:]          # (d_pos,   d_model)

    # The nn.Embedding "gather" over arange(S) + cid*S is a contiguous slice of the
    # table; take it in the wrapper (works for static or traced cid).
    start = jnp.asarray(cid, jnp.int32) * S
    pos_slab = jax.lax.dynamic_slice_in_dim(pos_table, start, S, axis=0)    # (S, d_pos)

    # Single kernel invocation, everything resident once in VMEM (~40 KB total).
    vmem = pl.BlockSpec(memory_space=pltpu.MemorySpace.VMEM)

    out, cpos = pl.pallas_call(
        _pos_embeddings_kernel,
        out_shape=(
            jax.ShapeDtypeStruct((B, S, d_model), embeddings.dtype),
            jax.ShapeDtypeStruct((B, d_pos), jnp.float32),
        ),
        in_specs=[vmem, vmem, vmem, vmem, vmem],
        out_specs=(vmem, vmem),
    )(embeddings, pos_slab, w_e, w_p, merge_b)

    return out, cpos


# ----------------------------- pure-JAX reference (exact module math, f32) -------

def _reference_pos_embeddings(embeddings, cid, pos_table, merge_w, merge_b):
    B, S, d_model = embeddings.shape
    d_pos = pos_table.shape[1]
    position_ids = jnp.arange(S, dtype=jnp.int32) + cid * S
    pos_emb = pos_table[position_ids]                                   # (S, d_pos)
    pos_emb_b = jnp.broadcast_to(pos_emb[None], (B, S, d_pos))
    cat = jnp.concatenate([embeddings, pos_emb_b], axis=-1)
    out = _elu(cat @ merge_w + merge_b)
    cpos = jnp.mean(pos_emb_b, axis=1)
    return out, cpos


# ----------------------------- main ----------------------------------------------

if __name__ == "__main__":
    # POSEmbeddings config: d_model=32, max_seq_len=64, dropout (unused in forward),
    # sinusoidal_pos_embds=True, d_pos=128.  Inputs: batch=2, seq=8, cid=3.
    B, S, d_model, d_pos, max_seq_len = 2, 8, 32, 128, 64
    cid = 3

    key = jax.random.PRNGKey(0)
    k_emb, k_w, k_b = jax.random.split(key, 3)
    embeddings = jax.random.normal(k_emb, (B, S, d_model), jnp.float32)
    merge_w = jax.random.normal(k_w, (d_model + d_pos, d_model), jnp.float32) * 0.02
    merge_b = jax.random.normal(k_b, (1, d_model), jnp.float32) * 0.02
    pos_table = create_sinusoidal_table(max_seq_len, d_pos)   # sinusoidal_pos_embds=True

    out, cpos = pos_embeddings_forward(embeddings, cid, pos_table, merge_w, merge_b)
    out, cpos = jax.block_until_ready((out, cpos))
    assert out.shape == (B, S, d_model) and cpos.shape == (B, d_pos)

    ref_out, ref_cpos = _reference_pos_embeddings(embeddings, cid, pos_table,
                                                  merge_w, merge_b)
    # Full f32 path now -> tight tolerances against the f32 reference.
    np.testing.assert_allclose(np.asarray(out), np.asarray(ref_out),
                               rtol=1e-5, atol=1e-5)
    np.testing.assert_allclose(np.asarray(cpos), np.asarray(ref_cpos),
                               rtol=1e-5, atol=1e-5)

    print("KERNEL_OK")
</pallas_src>

<mosaic_0001>
module attributes {stable_mosaic.version = 11 : i64} {
  func.func @_pos_embeddings_kernel(%arg0: memref<2x8x32xf32, #tpu.memory_space<vmem>>, %arg1: memref<8x128xf32, #tpu.memory_space<vmem>>, %arg2: memref<32x32xf32, #tpu.memory_space<vmem>>, %arg3: memref<128x32xf32, #tpu.memory_space<vmem>>, %arg4: memref<1x32xf32, #tpu.memory_space<vmem>>, %arg5: memref<2x8x32xf32, #tpu.memory_space<vmem>>, %arg6: memref<2x128xf32, #tpu.memory_space<vmem>>) attributes {dimension_semantics = [], scalar_prefetch = 0 : i64, scratch_operands = 0 : i64, tpu.core_type = #tpu.core_type<tc>} {
    %c0 = arith.constant 0 : index
    %c0_0 = arith.constant 0 : index
    %0 = vector.load %arg1[%c0, %c0_0] : memref<8x128xf32, #tpu.memory_space<vmem>>, vector<8x128xf32>
    %c0_1 = arith.constant 0 : index
    %c0_2 = arith.constant 0 : index
    %1 = vector.load %arg2[%c0_1, %c0_2] : memref<32x32xf32, #tpu.memory_space<vmem>>, vector<32x32xf32>
    %c0_3 = arith.constant 0 : index
    %c0_4 = arith.constant 0 : index
    %2 = vector.load %arg3[%c0_3, %c0_4] : memref<128x32xf32, #tpu.memory_space<vmem>>, vector<128x32xf32>
    %cst = arith.constant dense<0.000000e+00> : vector<8x32xf32>
    %3 = tpu.matmul %0, %2, %cst {dimension_numbers = #tpu.dot_dimension_numbers<[1], [0], [0], [1], [0, 0, 1, 1], [], []>} : vector<8x128xf32>, vector<128x32xf32>, vector<8x32xf32> -> vector<8x32xf32>
    %c0_5 = arith.constant 0 : index
    %c0_6 = arith.constant 0 : index
    %4 = vector.load %arg4[%c0_5, %c0_6] : memref<1x32xf32, #tpu.memory_space<vmem>>, vector<1x32xf32>
    %5 = vector.broadcast %4 : vector<1x32xf32> to vector<8x32xf32>
    %6 = arith.addf %3, %5 : vector<8x32xf32>
    %c0_7 = arith.constant 0 : index
    %c0_8 = arith.constant 0 : index
    %c0_9 = arith.constant 0 : index
    %7 = vector.load %arg0[%c0_7, %c0_8, %c0_9] : memref<2x8x32xf32, #tpu.memory_space<vmem>>, vector<1x8x32xf32>
    %8 = vector.shape_cast %7 : vector<1x8x32xf32> to vector<8x32xf32>
    %cst_10 = arith.constant dense<0.000000e+00> : vector<8x32xf32>
    %9 = tpu.matmul %8, %1, %cst_10 {dimension_numbers = #tpu.dot_dimension_numbers<[1], [0], [0], [1], [0, 0, 1, 1], [], []>} : vector<8x32xf32>, vector<32x32xf32>, vector<8x32xf32> -> vector<8x32xf32>
    %10 = arith.addf %9, %6 : vector<8x32xf32>
    %cst_11 = arith.constant 0.000000e+00 : f32
    %11 = vector.broadcast %cst_11 : f32 to vector<8x32xf32>
    %12 = arith.cmpf ogt, %10, %11 : vector<8x32xf32>
    %cst_12 = arith.constant 0.000000e+00 : f32
    %13 = vector.broadcast %cst_12 : f32 to vector<8x32xf32>
    %14 = arith.minimumf %10, %13 : vector<8x32xf32>
    %15 = math.exp %14 : vector<8x32xf32>
    %cst_13 = arith.constant 1.000000e+00 : f32
    %16 = vector.broadcast %cst_13 : f32 to vector<8x32xf32>
    %17 = arith.subf %15, %16 : vector<8x32xf32>
    %18 = arith.select %12, %10, %17 : vector<8x32xi1>, vector<8x32xf32>
    %c0_14 = arith.constant 0 : index
    %c0_15 = arith.constant 0 : index
    %c0_16 = arith.constant 0 : index
    %19 = vector.load %arg5[%c0_14, %c0_15, %c0_16] : memref<2x8x32xf32, #tpu.memory_space<vmem>>, vector<1x8x32xf32>
    %20 = vector.shape_cast %19 : vector<1x8x32xf32> to vector<8x32xf32>
    %21 = vector.shape_cast %18 : vector<8x32xf32> to vector<1x8x32xf32>
    tpu.vector_store %arg5[%c0_14, %c0_15, %c0_16], %21 {strides = array<i32>} : memref<2x8x32xf32, #tpu.memory_space<vmem>>, vector<1x8x32xf32>,
    %c1 = arith.constant 1 : index
    %c0_17 = arith.constant 0 : index
    %c0_18 = arith.constant 0 : index
    %22 = vector.load %arg0[%c1, %c0_17, %c0_18] : memref<2x8x32xf32, #tpu.memory_space<vmem>>, vector<1x8x32xf32>
    %23 = vector.shape_cast %22 : vector<1x8x32xf32> to vector<8x32xf32>
    %cst_19 = arith.constant dense<0.000000e+00> : vector<8x32xf32>
    %24 = tpu.matmul %23, %1, %cst_19 {dimension_numbers = #tpu.dot_dimension_numbers<[1], [0], [0], [1], [0, 0, 1, 1], [], []>} : vector<8x32xf32>, vector<32x32xf32>, vector<8x32xf32> -> vector<8x32xf32>
    %25 = arith.addf %24, %6 : vector<8x32xf32>
    %cst_20 = arith.constant 0.000000e+00 : f32
    %26 = vector.broadcast %cst_20 : f32 to vector<8x32xf32>
    %27 = arith.cmpf ogt, %25, %26 : vector<8x32xf32>
    %cst_21 = arith.constant 0.000000e+00 : f32
    %28 = vector.broadcast %cst_21 : f32 to vector<8x32xf32>
    %29 = arith.minimumf %25, %28 : vector<8x32xf32>
    %30 = math.exp %29 : vector<8x32xf32>
    %cst_22 = arith.constant 1.000000e+00 : f32
    %31 = vector.broadcast %cst_22 : f32 to vector<8x32xf32>
    %32 = arith.subf %30, %31 : vector<8x32xf32>
    %33 = arith.select %27, %25, %32 : vector<8x32xi1>, vector<8x32xf32>
    %c1_23 = arith.constant 1 : index
    %c0_24 = arith.constant 0 : index
    %c0_25 = arith.constant 0 : index
    %34 = vector.load %arg5[%c1_23, %c0_24, %c0_25] : memref<2x8x32xf32, #tpu.memory_space<vmem>>, vector<1x8x32xf32>
    %35 = vector.shape_cast %34 : vector<1x8x32xf32> to vector<8x32xf32>
    %36 = vector.shape_cast %33 : vector<8x32xf32> to vector<1x8x32xf32>
    tpu.vector_store %arg5[%c1_23, %c0_24, %c0_25], %36 {strides = array<i32>} : memref<2x8x32xf32, #tpu.memory_space<vmem>>, vector<1x8x32xf32>,
    %cst_26 = arith.constant dense<0.000000e+00> : vector<128xf32>
    %37 = vector.multi_reduction <add>, %0, %cst_26 [0] : vector<8x128xf32> to vector<128xf32>
    %38 = vector.shape_cast %37 : vector<128xf32> to vector<1x128xf32>
    %cst_27 = arith.constant 8.000000e+00 : f32
    %39 = vector.broadcast %cst_27 : f32 to vector<1x128xf32>
    %40 = arith.divf %38, %39 : vector<1x128xf32>
    %41 = vector.shape_cast %40 : vector<1x128xf32> to vector<1x128xf32>
    %42 = vector.broadcast %41 : vector<1x128xf32> to vector<2x128xf32>
    %c0_28 = arith.constant 0 : index
    %c0_29 = arith.constant 0 : index
    %43 = vector.load %arg6[%c0_28, %c0_29] : memref<2x128xf32, #tpu.memory_space<vmem>>, vector<2x128xf32>
    tpu.vector_store %arg6[%c0_28, %c0_29], %42 {strides = array<i32>} : memref<2x128xf32, #tpu.memory_space<vmem>>, vector<2x128xf32>,
    return
  }
}

</mosaic_0001>

<llo_original>
// kernel: tpu_custom_call.1
$region0: #{tpu_custom_call.1}
  #allocation0 [shape = 'u32[]', space=smem, size = 0x4, offset = 0x4, fixed_abs, tag = 'smem constant byte address 0x4 - core index']
  #allocation1 [shape = 'u32[72,128]{1,0:T(1,128)}', space=vmem, size = 0x9000, scoped, tag = 'internal scratch']
  %s0 = inlined_call_operand.vmem [shape: f32[2,8,32], index: 0, kind: input, shape index: {}]
  %s1 = inlined_call_operand.vmem [shape: f32[8,128], index: 1, kind: input, shape index: {}]
  %s2 = inlined_call_operand.vmem [shape: f32[32,32], index: 2, kind: input, shape index: {}]
  %s3 = inlined_call_operand.vmem [shape: f32[128,32], index: 3, kind: input, shape index: {}]
  %s4 = inlined_call_operand.vmem [shape: f32[1,32], index: 4, kind: input, shape index: {}]
  %s5 = inlined_call_operand.hbm [shape: f32[2,8,32], index: 5, kind: output, shape index: {0}]
  %s6 = inlined_call_operand.hbm [shape: f32[2,128], index: 6, kind: output, shape index: {1}]
  %7 = xla_tuple %s5, %s6
  %s8 = sld [smem:[#allocation0]]
  $region38: #{tpu_custom_call.1} parent=0
    _
  %s10 = ssub.s32 1, %s8
  %s11 = scalar_select 0, %s10, %s8
  $region1: #{tpu_custom_call.1} parent=0
    #allocation2 [shape = 'u8[8192]{0}', space=vmem, size = 0x2000, scoped, tag = 'output window, operand 0, single buffered']
    #allocation3 [shape = 's32[1]{0}', space=sflag, size = 0x4, scoped, tag = 'scoped memory for tpu_custom_call.1']
    #allocation4 [shape = 'u8[1024]{0}', space=vmem, size = 0x400, scoped, tag = 'output window, operand 1, single buffered']
    #allocation5 [shape = 's32[1]{0}', space=sflag, size = 0x4, scoped, tag = 'scoped memory for tpu_custom_call.1']
    %12 = vsyncpa [#allocation3], 0
    %13 = vsyncpa [#allocation5], 0
    // Predicated region
    $region2: #{tpu_custom_call.1} parent=1 // pred_check
      _
    $region3: #{tpu_custom_call.1} parent=1 // pred_check_branch
      %15 = sbr.rel (0) target = $region5
    $region4: #{tpu_custom_call.1} parent=1 // pred_region
      _
    $region5: #{tpu_custom_call.1} parent=1 // pred_fallthru
      _
    // Predicated region
    $region6: #{tpu_custom_call.1} parent=1 // pred_check
      _
    $region7: #{tpu_custom_call.1} parent=1 // pred_check_branch
      %17 = sbr.rel (0) target = $region9
    $region8: #{tpu_custom_call.1} parent=1 // pred_region
      _
    $region9: #{tpu_custom_call.1} parent=1 // pred_fallthru
      _
    // Predicated region
    $region10: #{tpu_custom_call.1} parent=1 // pred_check
      _
    $region11: #{tpu_custom_call.1} parent=1 // pred_check_branch
      %19 = sbr.rel (0) target = $region13
    $region12: #{tpu_custom_call.1} parent=1 // pred_region
      _
    $region13: #{tpu_custom_call.1} parent=1 // pred_fallthru
      _
    // Predicated region
    $region14: #{tpu_custom_call.1} parent=1 // pred_check
      _
    $region15: #{tpu_custom_call.1} parent=1 // pred_check_branch
      %21 = sbr.rel (0) target = $region17
    $region16: #{tpu_custom_call.1} parent=1 // pred_region
      _
    $region17: #{tpu_custom_call.1} parent=1 // pred_fallthru
      _
    // Predicated region
    $region18: #{tpu_custom_call.1} parent=1 // pred_check
      _
    $region19: #{tpu_custom_call.1} parent=1 // pred_check_branch
      %23 = sbr.rel (0) target = $region21
    $region20: #{tpu_custom_call.1} parent=1 // pred_region
      _
    $region21: #{tpu_custom_call.1} parent=1 // pred_fallthru
      _
    %v24 = vld [vmem:[%s1] sm:$0xff]
    %v25 = vld [vmem:[%s2] sm:$0xff]
    %v26 = vld [vmem:[%s2 + $0x8] sm:$0xff]
    %v27 = vld [vmem:[%s2 + $0x10] sm:$0xff]
    %v28 = vld [vmem:[%s2 + $0x18] sm:$0xff]
    %v29 = vld [vmem:[%s3] sm:$0xff]
    %v30 = vld [vmem:[%s3 + $0x8] sm:$0xff]
    %v31 = vld [vmem:[%s3 + $0x10] sm:$0xff]
    %v32 = vld [vmem:[%s3 + $0x18] sm:$0xff]
    %v33 = vld [vmem:[%s3 + $0x20] sm:$0xff]
    %v34 = vld [vmem:[%s3 + $0x28] sm:$0xff]
    %v35 = vld [vmem:[%s3 + $0x30] sm:$0xff]
    %v36 = vld [vmem:[%s3 + $0x38] sm:$0xff]
    %v37 = vld [vmem:[%s3 + $0x40] sm:$0xff]
    %v38 = vld [vmem:[%s3 + $0x48] sm:$0xff]
    %v39 = vld [vmem:[%s3 + $0x50] sm:$0xff]
    %v40 = vld [vmem:[%s3 + $0x58] sm:$0xff]
    %v41 = vld [vmem:[%s3 + $0x60] sm:$0xff]
    %v42 = vld [vmem:[%s3 + $0x68] sm:$0xff]
    %v43 = vld [vmem:[%s3 + $0x70] sm:$0xff]
    %v44 = vld [vmem:[%s3 + $0x78] sm:$0xff]
    %v45 = vld [vmem:[%s4] sm:$0x1]
    %v47 = vperm.slane %v45, 0
    %49 = vmatpush.msra.mxu0 %v44
    %50 = vmatpush.msra.mxu0 %v43
    %51 = vmatpush.msra.mxu0 %v42
    %52 = vmatpush.msra.mxu0 %v41
    %53 = vmatpush.msra.mxu0 %v40
    %54 = vmatpush.msra.mxu0 %v39
    %55 = vmatpush.msra.mxu0 %v38
    %56 = vmatpush.msra.mxu0 %v37
    %57 = vmatpush.msra.mxu0 %v36
    %58 = vmatpush.msra.mxu0 %v35
    %59 = vmatpush.msra.mxu0 %v34
    %60 = vmatpush.msra.mxu0 %v33
    %61 = vmatpush.msra.mxu0 %v32
    %62 = vmatpush.msra.mxu0 %v31
    %63 = vmatpush.msra.mxu0 %v30
    %64 = vmatpush.msra.mxu0 %v29
    %65 = vmatmul.f32.gmra.mxu0 %v24
    %v66 = vpop.f32.mrf.mxu0
    %v67 = vadd.f32 %v47, %v66
    %68 = vdwg.mxu0
    %v69 = vld [vmem:[%s0] sm:$0xff]
    %vm70 = vcmask 261120
    %v72 = vsel %vm70, %v69, 0
    %74 = vmatpush.msra.mxu0 0.0
    %75 = vmatpush.msra.mxu0 0.0
    %76 = vmatpush.msra.mxu0 0.0
    %77 = vmatpush.msra.mxu0 0.0
    %78 = vmatpush.msra.mxu0 0.0
    %79 = vmatpush.msra.mxu0 0.0
    %80 = vmatpush.msra.mxu0 0.0
    %81 = vmatpush.msra.mxu0 0.0
    %82 = vmatpush.msra.mxu0 0.0
    %83 = vmatpush.msra.mxu0 0.0
    %84 = vmatpush.msra.mxu0 0.0
    %85 = vmatpush.msra.mxu0 0.0
    %86 = vmatpush.msra.mxu0 %v28
    %87 = vmatpush.msra.mxu0 %v27
    %88 = vmatpush.msra.mxu0 %v26
    %89 = vmatpush.msra.mxu0 %v25
    %90 = vmatmul.f32.gmra.mxu0 %v72
    %v91 = vpop.f32.mrf.mxu0
    %v92 = vadd.f32 %v67, %v91
    %93 = vdwg.mxu0
    %vm94 = vcmp.gt.f32.partialorder %v92, 0.0
    %v95 = vmin.f32 %v92, 0.0
    %v96 = vmul.f32 %v95, 1.442695
    %v97 = vpow.pop %v96
    %v98 = vsub.f32 %v97, 1.0
    %v99 = vsel %vm94, %v92, %v98
    %100 = vst.msk [vmem:[#allocation2] sm:$0xff] %vm70, %v99
    %s101 = scalar_lea.vmem %s0, 8
    %v102 = vld [vmem:[%s101] sm:$0xff]
    %v104 = vsel %vm70, %v102, 0
    %106 = vmatpush.msra.mxu0 0.0
    %107 = vmatpush.msra.mxu0 0.0
    %108 = vmatpush.msra.mxu0 0.0
    %109 = vmatpush.msra.mxu0 0.0
    %110 = vmatpush.msra.mxu0 0.0
    %111 = vmatpush.msra.mxu0 0.0
    %112 = vmatpush.msra.mxu0 0.0
    %113 = vmatpush.msra.mxu0 0.0
    %114 = vmatpush.msra.mxu0 0.0
    %115 = vmatpush.msra.mxu0 0.0
    %116 = vmatpush.msra.mxu0 0.0
    %117 = vmatpush.msra.mxu0 0.0
    %118 = vmatpush.msra.mxu0 %v28
    %119 = vmatpush.msra.mxu0 %v27
    %120 = vmatpush.msra.mxu0 %v26
    %121 = vmatpush.msra.mxu0 %v25
    %122 = vmatmul.f32.gmra.mxu0 %v104
    %v123 = vpop.f32.mrf.mxu0
    %v124 = vadd.f32 %v67, %v123
    %125 = vdwg.mxu0
    %vm126 = vcmp.gt.f32.partialorder %v124, 0.0
    %v127 = vmin.f32 %v124, 0.0
    %v128 = vmul.f32 %v127, 1.442695
    %v129 = vpow.pop %v128
    %v130 = vsub.f32 %v129, 1.0
    %v131 = vsel %vm126, %v124, %v130
    %s132 = scalar_lea.vmem [#allocation2], 8
    %133 = vst.msk [vmem:[%s132] sm:$0xff] %vm70, %v131
    %v134 = vrot.slane %v24, 4
    %v135 = vadd.f32 %v24, %v134
    %v136 = vrot.slane %v135, 2
    %v137 = vadd.f32 %v135, %v136
    %v138 = vrot.slane %v137, 1
    %v139 = vadd.f32 %v137, %v138
    %v140 = vrcp.pop 8.0
    %v141 = vmul.f32 8.0, %v140
    %v142 = vsub.f32 1.0, %v141
    %v143 = vmul.f32 %v140, %v142
    %v144 = vadd.f32 %v140, %v143
    %vm145 = vweird.f32 %v140
    %v146 = vsel %vm145, %v140, %v144
    %v147 = vmul.f32 %v139, %v146
    %148 = vst [vmem:[#allocation4] sm:$0x3] %v147
    // Predicated region
    $region22: #{tpu_custom_call.1} parent=1 // pred_check
      _
    $region23: #{tpu_custom_call.1} parent=1 // pred_check_branch
      %150 = sbr.rel (0) target = $region25
    $region24: #{tpu_custom_call.1} parent=1 // pred_region
      %152 = vsyncadd [#allocation3], 0
      %s153 = sshll.u32 [#allocation2], 4
      %s154 = int_to_ptr.vmem [resolvable:$true] %s153
      %s155 = sshll.u32 %s5, 4
      %s156 = int_to_ptr.hbm [resolvable:$true] %s155
      %161 = dma.vmem_to_hbm [thread:$0]  %s154, 256, %s156, [#allocation3], 128, 128, 8
    $region25: #{tpu_custom_call.1} parent=1 // pred_fallthru
      _
    // Predicated region
    $region26: #{tpu_custom_call.1} parent=1 // pred_check
      _
    $region27: #{tpu_custom_call.1} parent=1 // pred_check_branch
      %163 = sbr.rel (0) target = $region29
    $region28: #{tpu_custom_call.1} parent=1 // pred_region
      %165 = vsyncadd [#allocation5], 0
      %s167 = sshll.u32 [#allocation4], 4
      %s168 = int_to_ptr.vmem [resolvable:$true] %s167
      %s169 = sshll.u32 %s6, 4
      %s170 = int_to_ptr.hbm [resolvable:$true] %s169
      %172 = dma.vmem_to_hbm [thread:$0]  %s168, 32, %s170, [#allocation5]
    $region29: #{tpu_custom_call.1} parent=1 // pred_fallthru
      _
    // Predicated region
    $region30: #{tpu_custom_call.1} parent=1 // pred_check
      _
    $region31: #{tpu_custom_call.1} parent=1 // pred_check_branch
      %174 = sbr.rel (0) target = $region33
    $region32: #{tpu_custom_call.1} parent=1 // pred_region
      %176 = dma.done [#allocation3], 256
    $region33: #{tpu_custom_call.1} parent=1 // pred_fallthru
      _
    // Predicated region
    $region34: #{tpu_custom_call.1} parent=1 // pred_check
      _
    $region35: #{tpu_custom_call.1} parent=1 // pred_check_branch
      %178 = sbr.rel (0) target = $region37
    $region36: #{tpu_custom_call.1} parent=1 // pred_region
      %180 = dma.done [#allocation5], 32
    $region37: #{tpu_custom_call.1} parent=1 // pred_fallthru
      _
    %181 = vsyncpa [#allocation3], 1
    %182 = vsyncpa [#allocation5], 1

</llo_original>
